<compile_context>
chip_gen: v7x
topology: tpu7x:2x2x1
jax: 0.10.0
libtpu: 0.0.40
codegen_flags: <defaults>
</compile_context>

<pallas_src>
import jax
import jax.numpy as jnp
from jax.experimental import pallas as pl
from jax.experimental.pallas import tpu as pltpu

NEG_SLOPE = 0.2
IN_FEATURES = 28 * 28


def _leaky_relu(x):
    return jnp.where(x > 0, x, NEG_SLOPE * x)


def _round_up(n, m):
    return ((n + m - 1) // m) * m


def _make_kernel(final_on_vpu):
    def kernel(x_ref,
               w1_ref, b1_ref,
               w2_ref, b2_ref,
               w3_ref, b3_ref,
               w4_ref, b4_ref,
               o_ref):
        # x_ref: (TB, 784) bf16 tile; weights resident in VMEM across grid steps.
        h = x_ref[...]

        a = jnp.dot(h, w1_ref[...], preferred_element_type=jnp.float32) + b1_ref[...]
        a = _leaky_relu(a)                                  # dropout -> identity (eval)

        a = jnp.dot(a.astype(jnp.bfloat16), w2_ref[...],
                    preferred_element_type=jnp.float32) + b2_ref[...]
        a = _leaky_relu(a)

        a = jnp.dot(a.astype(jnp.bfloat16), w3_ref[...],
                    preferred_element_type=jnp.float32) + b3_ref[...]
        a = _leaky_relu(a)                                  # (TB, hidden) f32

        if final_on_vpu:
            # out_dim == 1: hidden->1 projection on the VPU (mul + lane reduce),
            # avoids a throwaway MXU pass with a single live output column.
            out = jnp.sum(a * w4_ref[...], axis=-1, keepdims=True) + b4_ref[...]
        else:
            out = jnp.dot(a.astype(jnp.bfloat16), w4_ref[...],
                          preferred_element_type=jnp.float32) + b4_ref[...]

        o_ref[...] = _leaky_relu(out).astype(o_ref.dtype)   # spec: LeakyReLU after fc4

    return kernel


def discriminator_forward(x, params, *, block_b=256):
    """x: anything that flattens to (-1, 784), like PyTorch's x.view(-1, 28*28).
    params: w_i stored as (in, out), b_i as (1, out), all float32."""
    x2d = x.reshape(-1, IN_FEATURES)
    B = x2d.shape[0]
    out_dim = params["w4"].shape[1]

    # Batch tile: 256 fills MXU LHS rows on v6e/v7x and is a multiple of 128
    # for v5e; shrink (multiple of 8 sublanes) for tiny batches.
    tb = min(block_b, _round_up(B, 8))
    B_pad = _round_up(B, tb)
    if B_pad != B:
        x2d = jnp.pad(x2d, ((0, B_pad - B), (0, 0)))
    x_bf16 = x2d.astype(jnp.bfloat16)

    # Weights bf16 (MXU-native), biases f32 (added to f32 accumulator).
    w1 = params["w1"].astype(jnp.bfloat16)
    w2 = params["w2"].astype(jnp.bfloat16)
    w3 = params["w3"].astype(jnp.bfloat16)
    b1 = params["b1"].astype(jnp.float32)
    b2 = params["b2"].astype(jnp.float32)
    b3 = params["b3"].astype(jnp.float32)
    b4 = params["b4"].astype(jnp.float32)

    final_on_vpu = (out_dim == 1)
    if final_on_vpu:
        w4 = params["w4"].reshape(1, -1).astype(jnp.float32)   # (1, hidden), VPU path
    else:
        w4 = params["w4"].astype(jnp.bfloat16)                 # (hidden, out_dim), MXU

    def batch_map(i):
        return (i, 0)

    def const_map(i):
        return (0, 0)

    in_specs = [
        pl.BlockSpec((tb, IN_FEATURES), batch_map),   # x: streamed per grid step
        pl.BlockSpec(w1.shape, const_map),            # weights/biases: VMEM-resident
        pl.BlockSpec(b1.shape, const_map),
        pl.BlockSpec(w2.shape, const_map),
        pl.BlockSpec(b2.shape, const_map),
        pl.BlockSpec(w3.shape, const_map),
        pl.BlockSpec(b3.shape, const_map),
        pl.BlockSpec(w4.shape, const_map),
        pl.BlockSpec(b4.shape, const_map),
    ]

    h1, h2, h3 = params["w1"].shape[1], params["w2"].shape[1], params["w3"].shape[1]
    flops = 2 * B_pad * (IN_FEATURES * h1 + h1 * h2 + h2 * h3 + h3 * out_dim)
    bytes_accessed = (x_bf16.size * 2 + B_pad * out_dim * 4
                      + sum(int(a.size) * a.dtype.itemsize
                            for a in (w1, b1, w2, b2, w3, b3, w4, b4)))

    out_pad = pl.pallas_call(
        _make_kernel(final_on_vpu),
        out_shape=jax.ShapeDtypeStruct((B_pad, out_dim), jnp.float32),
        grid=(B_pad // tb,),
        in_specs=in_specs,
        out_specs=pl.BlockSpec((tb, out_dim), batch_map),
        compiler_params=pltpu.CompilerParams(
            dimension_semantics=("parallel",)),
        cost_estimate=pl.CostEstimate(
            flops=flops, transcendentals=0, bytes_accessed=bytes_accessed),
    )(x_bf16, w1, b1, w2, b2, w3, b3, w4, b4)

    return out_pad[:B]


def init_params(key, input_size, hidden_dim, output_size):
    """nn.Linear-like init; weights stored transposed as (in, out)."""
    dims = [input_size, hidden_dim * 4, hidden_dim * 2, hidden_dim, output_size]
    params = {}
    for i in range(4):
        key, kw, kb = jax.random.split(key, 3)
        bound = 1.0 / jnp.sqrt(dims[i])
        params[f"w{i+1}"] = jax.random.uniform(
            kw, (dims[i], dims[i + 1]), jnp.float32, -bound, bound)
        params[f"b{i+1}"] = jax.random.uniform(
            kb, (1, dims[i + 1]), jnp.float32, -bound, bound)
    return params


def reference_forward(x, params):
    """Pure-JAX reference mirroring the kernel's bf16-input / f32-accumulate numerics."""
    def bf(v):
        return v.astype(jnp.bfloat16).astype(jnp.float32)

    h = bf(x.reshape(-1, IN_FEATURES))
    h = _leaky_relu(h @ bf(params["w1"]) + params["b1"])
    h = _leaky_relu(bf(h) @ bf(params["w2"]) + params["b2"])
    h = _leaky_relu(bf(h) @ bf(params["w3"]) + params["b3"])
    out_dim = params["w4"].shape[1]
    if out_dim == 1:
        h = h @ params["w4"] + params["b4"]
    else:
        h = bf(h) @ bf(params["w4"]) + params["b4"]
    return _leaky_relu(h)


if __name__ == "__main__":
    input_size = 28 * 28     # forward hard-codes view(-1, 784)
    hidden_dim = 32          # fc sizes: 784 -> 128 -> 64 -> 32 -> 1
    output_size = 1
    batch = 4

    key = jax.random.PRNGKey(0)
    key, kx = jax.random.split(key)
    params = init_params(key, input_size, hidden_dim, output_size)

    # Input shaped like MNIST images (B, 1, 28, 28); kernel flattens to (B, 784).
    x = jax.random.normal(kx, (batch, 1, 28, 28), jnp.float32)

    out = discriminator_forward(x, params)
    out = jax.block_until_ready(out)

    ref = reference_forward(x, params)
    assert out.shape == (batch, output_size), out.shape
    assert jnp.allclose(out, ref, atol=2e-2, rtol=2e-2), "mismatch vs JAX reference"

    print("KERNEL_OK")
</pallas_src>

<mosaic_0001>
module attributes {stable_mosaic.version = 11 : i64} {
  func.func @kernel(%arg0: i32, %arg1: memref<8x784xbf16, #tpu.memory_space<vmem>>, %arg2: memref<784x128xbf16, #tpu.memory_space<vmem>>, %arg3: memref<1x128xf32, #tpu.memory_space<vmem>>, %arg4: memref<128x64xbf16, #tpu.memory_space<vmem>>, %arg5: memref<1x64xf32, #tpu.memory_space<vmem>>, %arg6: memref<64x32xbf16, #tpu.memory_space<vmem>>, %arg7: memref<1x32xf32, #tpu.memory_space<vmem>>, %arg8: memref<1x32xf32, #tpu.memory_space<vmem>>, %arg9: memref<1x1xf32, #tpu.memory_space<vmem>>, %arg10: memref<8x1xf32, #tpu.memory_space<vmem>>) attributes {dimension_semantics = [#tpu.dimension_semantics<parallel>], iteration_bounds = array<i64: 1>, scalar_prefetch = 0 : i64, scratch_operands = 0 : i64, tpu.core_type = #tpu.core_type<tc>, window_params = [{transform_indices = @transform_0, window_bounds = array<i64: 8, 784>}, {pipeline_mode = #tpu.pipeline_mode<synchronous>, transform_indices = @transform_1, window_bounds = array<i64: 784, 128>}, {pipeline_mode = #tpu.pipeline_mode<synchronous>, transform_indices = @transform_2, window_bounds = array<i64: 1, 128>}, {pipeline_mode = #tpu.pipeline_mode<synchronous>, transform_indices = @transform_3, window_bounds = array<i64: 128, 64>}, {pipeline_mode = #tpu.pipeline_mode<synchronous>, transform_indices = @transform_4, window_bounds = array<i64: 1, 64>}, {pipeline_mode = #tpu.pipeline_mode<synchronous>, transform_indices = @transform_5, window_bounds = array<i64: 64, 32>}, {pipeline_mode = #tpu.pipeline_mode<synchronous>, transform_indices = @transform_6, window_bounds = array<i64: 1, 32>}, {pipeline_mode = #tpu.pipeline_mode<synchronous>, transform_indices = @transform_7, window_bounds = array<i64: 1, 32>}, {pipeline_mode = #tpu.pipeline_mode<synchronous>, transform_indices = @transform_8, window_bounds = array<i64: 1, 1>}, {transform_indices = @transform_9, window_bounds = array<i64: 8, 1>}]} {
    %c0 = arith.constant 0 : index
    %c0_0 = arith.constant 0 : index
    %0 = vector.load %arg1[%c0, %c0_0] : memref<8x784xbf16, #tpu.memory_space<vmem>>, vector<8x784xbf16>
    %c0_1 = arith.constant 0 : index
    %c0_2 = arith.constant 0 : index
    %1 = vector.load %arg2[%c0_1, %c0_2] : memref<784x128xbf16, #tpu.memory_space<vmem>>, vector<784x128xbf16>
    %cst = arith.constant dense<0.000000e+00> : vector<8x128xf32>
    %2 = tpu.matmul %0, %1, %cst {dimension_numbers = #tpu.dot_dimension_numbers<[1], [0], [0], [1], [0, 0, 1, 1], [], []>} : vector<8x784xbf16>, vector<784x128xbf16>, vector<8x128xf32> -> vector<8x128xf32>
    %c0_3 = arith.constant 0 : index
    %c0_4 = arith.constant 0 : index
    %3 = vector.load %arg3[%c0_3, %c0_4] : memref<1x128xf32, #tpu.memory_space<vmem>>, vector<1x128xf32>
    %4 = vector.broadcast %3 : vector<1x128xf32> to vector<8x128xf32>
    %5 = arith.addf %2, %4 : vector<8x128xf32>
    %cst_5 = arith.constant 0.000000e+00 : f32
    %6 = vector.broadcast %cst_5 : f32 to vector<8x128xf32>
    %7 = arith.cmpf ogt, %5, %6 : vector<8x128xf32>
    %cst_6 = arith.constant 2.000000e-01 : f32
    %8 = vector.broadcast %cst_6 : f32 to vector<8x128xf32>
    %9 = arith.mulf %8, %5 : vector<8x128xf32>
    %10 = arith.select %7, %5, %9 : vector<8x128xi1>, vector<8x128xf32>
    %11 = arith.truncf %10 : vector<8x128xf32> to vector<8x128xbf16>
    %c0_7 = arith.constant 0 : index
    %c0_8 = arith.constant 0 : index
    %12 = vector.load %arg4[%c0_7, %c0_8] : memref<128x64xbf16, #tpu.memory_space<vmem>>, vector<128x64xbf16>
    %cst_9 = arith.constant dense<0.000000e+00> : vector<8x64xf32>
    %13 = tpu.matmul %11, %12, %cst_9 {dimension_numbers = #tpu.dot_dimension_numbers<[1], [0], [0], [1], [0, 0, 1, 1], [], []>} : vector<8x128xbf16>, vector<128x64xbf16>, vector<8x64xf32> -> vector<8x64xf32>
    %c0_10 = arith.constant 0 : index
    %c0_11 = arith.constant 0 : index
    %14 = vector.load %arg5[%c0_10, %c0_11] : memref<1x64xf32, #tpu.memory_space<vmem>>, vector<1x64xf32>
    %15 = vector.broadcast %14 : vector<1x64xf32> to vector<8x64xf32>
    %16 = arith.addf %13, %15 : vector<8x64xf32>
    %cst_12 = arith.constant 0.000000e+00 : f32
    %17 = vector.broadcast %cst_12 : f32 to vector<8x64xf32>
    %18 = arith.cmpf ogt, %16, %17 : vector<8x64xf32>
    %cst_13 = arith.constant 2.000000e-01 : f32
    %19 = vector.broadcast %cst_13 : f32 to vector<8x64xf32>
    %20 = arith.mulf %19, %16 : vector<8x64xf32>
    %21 = arith.select %18, %16, %20 : vector<8x64xi1>, vector<8x64xf32>
    %22 = arith.truncf %21 : vector<8x64xf32> to vector<8x64xbf16>
    %c0_14 = arith.constant 0 : index
    %c0_15 = arith.constant 0 : index
    %23 = vector.load %arg6[%c0_14, %c0_15] : memref<64x32xbf16, #tpu.memory_space<vmem>>, vector<64x32xbf16>
    %cst_16 = arith.constant dense<0.000000e+00> : vector<8x32xf32>
    %24 = tpu.matmul %22, %23, %cst_16 {dimension_numbers = #tpu.dot_dimension_numbers<[1], [0], [0], [1], [0, 0, 1, 1], [], []>} : vector<8x64xbf16>, vector<64x32xbf16>, vector<8x32xf32> -> vector<8x32xf32>
    %c0_17 = arith.constant 0 : index
    %c0_18 = arith.constant 0 : index
    %25 = vector.load %arg7[%c0_17, %c0_18] : memref<1x32xf32, #tpu.memory_space<vmem>>, vector<1x32xf32>
    %26 = vector.broadcast %25 : vector<1x32xf32> to vector<8x32xf32>
    %27 = arith.addf %24, %26 : vector<8x32xf32>
    %cst_19 = arith.constant 0.000000e+00 : f32
    %28 = vector.broadcast %cst_19 : f32 to vector<8x32xf32>
    %29 = arith.cmpf ogt, %27, %28 : vector<8x32xf32>
    %cst_20 = arith.constant 2.000000e-01 : f32
    %30 = vector.broadcast %cst_20 : f32 to vector<8x32xf32>
    %31 = arith.mulf %30, %27 : vector<8x32xf32>
    %32 = arith.select %29, %27, %31 : vector<8x32xi1>, vector<8x32xf32>
    %c0_21 = arith.constant 0 : index
    %c0_22 = arith.constant 0 : index
    %33 = vector.load %arg8[%c0_21, %c0_22] : memref<1x32xf32, #tpu.memory_space<vmem>>, vector<1x32xf32>
    %34 = vector.broadcast %33 : vector<1x32xf32> to vector<8x32xf32>
    %35 = arith.mulf %32, %34 : vector<8x32xf32>
    %cst_23 = arith.constant dense<0.000000e+00> : vector<8xf32>
    %36 = vector.multi_reduction <add>, %35, %cst_23 [1] : vector<8x32xf32> to vector<8xf32>
    %37 = vector.shape_cast %36 : vector<8xf32> to vector<8x1xf32>
    %c0_24 = arith.constant 0 : index
    %c0_25 = arith.constant 0 : index
    %38 = vector.load %arg9[%c0_24, %c0_25] : memref<1x1xf32, #tpu.memory_space<vmem>>, vector<1x1xf32>
    %39 = vector.broadcast %38 : vector<1x1xf32> to vector<8x1xf32>
    %40 = arith.addf %37, %39 : vector<8x1xf32>
    %cst_26 = arith.constant 0.000000e+00 : f32
    %41 = vector.broadcast %cst_26 : f32 to vector<8x1xf32>
    %42 = arith.cmpf ogt, %40, %41 : vector<8x1xf32>
    %cst_27 = arith.constant 2.000000e-01 : f32
    %43 = vector.broadcast %cst_27 : f32 to vector<8x1xf32>
    %44 = arith.mulf %43, %40 : vector<8x1xf32>
    %45 = arith.select %42, %40, %44 : vector<8x1xi1>, vector<8x1xf32>
    %c0_28 = arith.constant 0 : index
    %c0_29 = arith.constant 0 : index
    %46 = vector.load %arg10[%c0_28, %c0_29] : memref<8x1xf32, #tpu.memory_space<vmem>>, vector<8x1xf32>
    tpu.vector_store %arg10[%c0_28, %c0_29], %45 {strides = array<i32>} : memref<8x1xf32, #tpu.memory_space<vmem>>, vector<8x1xf32>,
    return
  }
  func.func @transform_0(%arg0: i32) -> (i32, i32) {
    %c0_i32 = arith.constant 0 : i32
    %c0_i32_0 = arith.constant 0 : i32
    return %arg0, %c0_i32 : i32, i32
  }
  func.func @transform_1(%arg0: i32) -> (i32, i32) {
    %c0_i32 = arith.constant 0 : i32
    %c0_i32_0 = arith.constant 0 : i32
    %c0_i32_1 = arith.constant 0 : i32
    return %c0_i32, %c0_i32_0 : i32, i32
  }
  func.func @transform_2(%arg0: i32) -> (i32, i32) {
    %c0_i32 = arith.constant 0 : i32
    %c0_i32_0 = arith.constant 0 : i32
    %c0_i32_1 = arith.constant 0 : i32
    return %c0_i32, %c0_i32_0 : i32, i32
  }
  func.func @transform_3(%arg0: i32) -> (i32, i32) {
    %c0_i32 = arith.constant 0 : i32
    %c0_i32_0 = arith.constant 0 : i32
    %c0_i32_1 = arith.constant 0 : i32
    return %c0_i32, %c0_i32_0 : i32, i32
  }
  func.func @transform_4(%arg0: i32) -> (i32, i32) {
    %c0_i32 = arith.constant 0 : i32
    %c0_i32_0 = arith.constant 0 : i32
    %c0_i32_1 = arith.constant 0 : i32
    return %c0_i32, %c0_i32_0 : i32, i32
  }
  func.func @transform_5(%arg0: i32) -> (i32, i32) {
    %c0_i32 = arith.constant 0 : i32
    %c0_i32_0 = arith.constant 0 : i32
    %c0_i32_1 = arith.constant 0 : i32
    return %c0_i32, %c0_i32_0 : i32, i32
  }
  func.func @transform_6(%arg0: i32) -> (i32, i32) {
    %c0_i32 = arith.constant 0 : i32
    %c0_i32_0 = arith.constant 0 : i32
    %c0_i32_1 = arith.constant 0 : i32
    return %c0_i32, %c0_i32_0 : i32, i32
  }
  func.func @transform_7(%arg0: i32) -> (i32, i32) {
    %c0_i32 = arith.constant 0 : i32
    %c0_i32_0 = arith.constant 0 : i32
    %c0_i32_1 = arith.constant 0 : i32
    return %c0_i32, %c0_i32_0 : i32, i32
  }
  func.func @transform_8(%arg0: i32) -> (i32, i32) {
    %c0_i32 = arith.constant 0 : i32
    %c0_i32_0 = arith.constant 0 : i32
    %c0_i32_1 = arith.constant 0 : i32
    return %c0_i32, %c0_i32_0 : i32, i32
  }
  func.func @transform_9(%arg0: i32) -> (i32, i32) {
    %c0_i32 = arith.constant 0 : i32
    %c0_i32_0 = arith.constant 0 : i32
    return %arg0, %c0_i32 : i32, i32
  }
}

</mosaic_0001>

<llo_original>
// kernel: tpu_custom_call.1
$region0: #{tpu_custom_call.1}
  #allocation0 [shape = 'u32[]', space=smem, size = 0x4, offset = 0x4, fixed_abs, tag = 'smem constant byte address 0x4 - core index']
  #allocation1 [shape = 'u32[144,128]{1,0:T(1,128)}', space=vmem, size = 0x12000, scoped, tag = 'internal scratch']
  #allocation2 [shape = 'f32[1,1]{1,0:T(1,128)S(1)}', space=vmem, size = 0x200, scoped, tag = 'scoped memory for tpu_custom_call.1']
  %s0 = inlined_call_operand.vmem [shape: bf16[8,784], index: 0, kind: input, shape index: {}]
  %s1 = inlined_call_operand.hbm [shape: bf16[784,128], index: 1, kind: input, shape index: {}]
  %s2 = inlined_call_operand.vmem [shape: f32[1,128], index: 2, kind: input, shape index: {}]
  %s3 = inlined_call_operand.vmem [shape: bf16[128,64], index: 3, kind: input, shape index: {}]
  %s4 = inlined_call_operand.vmem [shape: f32[1,64], index: 4, kind: input, shape index: {}]
  %s5 = inlined_call_operand.vmem [shape: bf16[64,32], index: 5, kind: input, shape index: {}]
  %s6 = inlined_call_operand.vmem [shape: f32[1,32], index: 6, kind: input, shape index: {}]
  %s7 = inlined_call_operand.vmem [shape: f32[1,32], index: 7, kind: input, shape index: {}]
  %s8 = inlined_call_operand.<no memory space> [shape: f32[1,1], index: 8, kind: input, shape index: {}]
  %s9 = inlined_call_operand.vmem [shape: f32[8,1], index: 9, kind: output, shape index: {}]
  %s10 = sld [smem:[#allocation0]]
  $region50: #{tpu_custom_call.1} parent=0
    _
  %s12 = ssub.s32 1, %s10
  %s13 = scalar_select 0, %s12, %s10
  %v14 = vstv %s8
  %15 = vst [vmem:[#allocation2] sm:$0x1] %v14
  $region1: #{tpu_custom_call.1} parent=0
    #allocation3 [shape = 'u8[200704]{0}', space=vmem, size = 0x31000, scoped, tag = 'input window, operand 1, single buffered']
    #allocation4 [shape = 's32[1]{0}', space=sflag, size = 0x4, scoped, tag = 'scoped memory for tpu_custom_call.1']
    %16 = vsyncpa [#allocation4], 0
    // Predicated region
    $region2: #{tpu_custom_call.1} parent=1 // pred_check
      _
    $region3: #{tpu_custom_call.1} parent=1 // pred_check_branch
      %18 = sbr.rel (0) target = $region5
    $region4: #{tpu_custom_call.1} parent=1 // pred_region
      _
    $region5: #{tpu_custom_call.1} parent=1 // pred_fallthru
      _
    // Predicated region
    $region6: #{tpu_custom_call.1} parent=1 // pred_check
      _
    $region7: #{tpu_custom_call.1} parent=1 // pred_check_branch
      %20 = sbr.rel (0) target = $region9
    $region8: #{tpu_custom_call.1} parent=1 // pred_region
      %s22 = ssub.s32 6272, 6272
      %23 = vsyncadd [#allocation4], %s22
      %s24 = sshll.u32 [#allocation3], 4
      %s25 = int_to_ptr.vmem [resolvable:$true] %s24
      %30 = dma.hbm_to_vmem [thread:$0]  %s1, 6272, %s25, [#allocation4], 64, 64, 4
    $region9: #{tpu_custom_call.1} parent=1 // pred_fallthru
      _
    // Predicated region
    $region10: #{tpu_custom_call.1} parent=1 // pred_check
      _
    $region11: #{tpu_custom_call.1} parent=1 // pred_check_branch
      %32 = sbr.rel (0) target = $region13
    $region12: #{tpu_custom_call.1} parent=1 // pred_region
      _
    $region13: #{tpu_custom_call.1} parent=1 // pred_fallthru
      _
    // Predicated region
    $region14: #{tpu_custom_call.1} parent=1 // pred_check
      _
    $region15: #{tpu_custom_call.1} parent=1 // pred_check_branch
      %34 = sbr.rel (0) target = $region17
    $region16: #{tpu_custom_call.1} parent=1 // pred_region
      _
    $region17: #{tpu_custom_call.1} parent=1 // pred_fallthru
      _
    // Predicated region
    $region18: #{tpu_custom_call.1} parent=1 // pred_check
      _
    $region19: #{tpu_custom_call.1} parent=1 // pred_check_branch
      %36 = sbr.rel (0) target = $region21
    $region20: #{tpu_custom_call.1} parent=1 // pred_region
      _
    $region21: #{tpu_custom_call.1} parent=1 // pred_fallthru
      _
    // Predicated region
    $region22: #{tpu_custom_call.1} parent=1 // pred_check
      _
    $region23: #{tpu_custom_call.1} parent=1 // pred_check_branch
      %38 = sbr.rel (0) target = $region25
    $region24: #{tpu_custom_call.1} parent=1 // pred_region
      _
    $region25: #{tpu_custom_call.1} parent=1 // pred_fallthru
      _
    // Predicated region
    $region26: #{tpu_custom_call.1} parent=1 // pred_check
      _
    $region27: #{tpu_custom_call.1} parent=1 // pred_check_branch
      %40 = sbr.rel (0) target = $region29
    $region28: #{tpu_custom_call.1} parent=1 // pred_region
      _
    $region29: #{tpu_custom_call.1} parent=1 // pred_fallthru
      _
    // Predicated region
    $region30: #{tpu_custom_call.1} parent=1 // pred_check
      _
    $region31: #{tpu_custom_call.1} parent=1 // pred_check_branch
      %42 = sbr.rel (0) target = $region33
    $region32: #{tpu_custom_call.1} parent=1 // pred_region
      _
    $region33: #{tpu_custom_call.1} parent=1 // pred_fallthru
      _
    // Predicated region
    $region34: #{tpu_custom_call.1} parent=1 // pred_check
      _
    $region35: #{tpu_custom_call.1} parent=1 // pred_check_branch
      %44 = sbr.rel (0) target = $region37
    $region36: #{tpu_custom_call.1} parent=1 // pred_region
      _
    $region37: #{tpu_custom_call.1} parent=1 // pred_fallthru
      _
    // Predicated region
    $region38: #{tpu_custom_call.1} parent=1 // pred_check
      _
    $region39: #{tpu_custom_call.1} parent=1 // pred_check_branch
      %46 = sbr.rel (0) target = $region41
    $region40: #{tpu_custom_call.1} parent=1 // pred_region
      %47 = dma.done [#allocation4], 6272
    $region41: #{tpu_custom_call.1} parent=1 // pred_fallthru
      _
    %v49 = vld [vmem:[%s0] sm:$0xff]
    %v50 = vld [vmem:[%s0 + $0x8] sm:$0xff]
    %v51 = vld [vmem:[%s0 + $0x10] sm:$0xff]
    %v52 = vld [vmem:[%s0 + $0x18] sm:$0xf]
    %v53 = vld [vmem:[#allocation3] sm:$0xf]
    %v54 = vld [vmem:[#allocation3 + $0x4] sm:$0xf]
    %v55 = vld [vmem:[#allocation3 + $0x8] sm:$0xf]
    %v56 = vld [vmem:[#allocation3 + $0xc] sm:$0xf]
    %v57 = vld [vmem:[#allocation3 + $0x10] sm:$0xf]
    %v58 = vld [vmem:[#allocation3 + $0x14] sm:$0xf]
    %v59 = vld [vmem:[#allocation3 + $0x18] sm:$0xf]
    %v60 = vld [vmem:[#allocation3 + $0x1c] sm:$0xf]
    %v61 = vld [vmem:[#allocation3 + $0x20] sm:$0xf]
    %v62 = vld [vmem:[#allocation3 + $0x24] sm:$0xf]
    %v63 = vld [vmem:[#allocation3 + $0x28] sm:$0xf]
    %v64 = vld [vmem:[#allocation3 + $0x2c] sm:$0xf]
    %v65 = vld [vmem:[#allocation3 + $0x30] sm:$0xf]
    %v66 = vld [vmem:[#allocation3 + $0x34] sm:$0xf]
    %v67 = vld [vmem:[#allocation3 + $0x38] sm:$0xf]
    %v68 = vld [vmem:[#allocation3 + $0x3c] sm:$0xf]
    %v69 = vld [vmem:[#allocation3 + $0x40] sm:$0xf]
    %v70 = vld [vmem:[#allocation3 + $0x44] sm:$0xf]
    %v71 = vld [vmem:[#allocation3 + $0x48] sm:$0xf]
    %v72 = vld [vmem:[#allocation3 + $0x4c] sm:$0xf]
    %v73 = vld [vmem:[#allocation3 + $0x50] sm:$0xf]
    %v74 = vld [vmem:[#allocation3 + $0x54] sm:$0xf]
    %v75 = vld [vmem:[#allocation3 + $0x58] sm:$0xf]
    %v76 = vld [vmem:[#allocation3 + $0x5c] sm:$0xf]
    %v77 = vld [vmem:[#allocation3 + $0x60] sm:$0xf]
    %v78 = vld [vmem:[#allocation3 + $0x64] sm:$0xf]
    %v79 = vld [vmem:[#allocation3 + $0x68] sm:$0xf]
    %v80 = vld [vmem:[#allocation3 + $0x6c] sm:$0xf]
    %v81 = vld [vmem:[#allocation3 + $0x70] sm:$0xf]
    %v82 = vld [vmem:[#allocation3 + $0x74] sm:$0xf]
    %v83 = vld [vmem:[#allocation3 + $0x78] sm:$0xf]
    %v84 = vld [vmem:[#allocation3 + $0x7c] sm:$0xf]
    %v85 = vld [vmem:[#allocation3 + $0x80] sm:$0xf]
    %v86 = vld [vmem:[#allocation3 + $0x84] sm:$0xf]
    %v87 = vld [vmem:[#allocation3 + $0x88] sm:$0xf]
    %v88 = vld [vmem:[#allocation3 + $0x8c] sm:$0xf]
    %v89 = vld [vmem:[#allocation3 + $0x90] sm:$0xf]
    %v90 = vld [vmem:[#allocation3 + $0x94] sm:$0xf]
    %v91 = vld [vmem:[#allocation3 + $0x98] sm:$0xf]
    %v92 = vld [vmem:[#allocation3 + $0x9c] sm:$0xf]
    %v93 = vld [vmem:[#allocation3 + $0xa0] sm:$0xf]
    %v94 = vld [vmem:[#allocation3 + $0xa4] sm:$0xf]
    %v95 = vld [vmem:[#allocation3 + $0xa8] sm:$0xf]
    %v96 = vld [vmem:[#allocation3 + $0xac] sm:$0xf]
    %v97 = vld [vmem:[#allocation3 + $0xb0] sm:$0xf]
    %v98 = vld [vmem:[#allocation3 + $0xb4] sm:$0xf]
    %v99 = vld [vmem:[#allocation3 + $0xb8] sm:$0xf]
    %v100 = vld [vmem:[#allocation3 + $0xbc] sm:$0xf]
    %v101 = vld [vmem:[#allocation3 + $0xc0] sm:$0xf]
    %v102 = vld [vmem:[#allocation3 + $0xc4] sm:$0xf]
    %v103 = vld [vmem:[#allocation3 + $0xc8] sm:$0xf]
    %v104 = vld [vmem:[#allocation3 + $0xcc] sm:$0xf]
    %v105 = vld [vmem:[#allocation3 + $0xd0] sm:$0xf]
    %v106 = vld [vmem:[#allocation3 + $0xd4] sm:$0xf]
    %v107 = vld [vmem:[#allocation3 + $0xd8] sm:$0xf]
    %v108 = vld [vmem:[#allocation3 + $0xdc] sm:$0xf]
    %v109 = vld [vmem:[#allocation3 + $0xe0] sm:$0xf]
    %v110 = vld [vmem:[#allocation3 + $0xe4] sm:$0xf]
    %v111 = vld [vmem:[#allocation3 + $0xe8] sm:$0xf]
    %v112 = vld [vmem:[#allocation3 + $0xec] sm:$0xf]
    %v113 = vld [vmem:[#allocation3 + $0xf0] sm:$0xf]
    %v114 = vld [vmem:[#allocation3 + $0xf4] sm:$0xf]
    %v115 = vld [vmem:[#allocation3 + $0xf8] sm:$0xf]
    %v116 = vld [vmem:[#allocation3 + $0xfc] sm:$0xf]
    %v117 = vld [vmem:[#allocation3 + $0x100] sm:$0xf]
    %v118 = vld [vmem:[#allocation3 + $0x104] sm:$0xf]
    %v119 = vld [vmem:[#allocation3 + $0x108] sm:$0xf]
    %v120 = vld [vmem:[#allocation3 + $0x10c] sm:$0xf]
    %v121 = vld [vmem:[#allocation3 + $0x110] sm:$0xf]
    %v122 = vld [vmem:[#allocation3 + $0x114] sm:$0xf]
    %v123 = vld [vmem:[#allocation3 + $0x118] sm:$0xf]
    %v124 = vld [vmem:[#allocation3 + $0x11c] sm:$0xf]
    %v125 = vld [vmem:[#allocation3 + $0x120] sm:$0xf]
    %v126 = vld [vmem:[#allocation3 + $0x124] sm:$0xf]
    %v127 = vld [vmem:[#allocation3 + $0x128] sm:$0xf]
    %v128 = vld [vmem:[#allocation3 + $0x12c] sm:$0xf]
    %v129 = vld [vmem:[#allocation3 + $0x130] sm:$0xf]
    %v130 = vld [vmem:[#allocation3 + $0x134] sm:$0xf]
    %v131 = vld [vmem:[#allocation3 + $0x138] sm:$0xf]
    %v132 = vld [vmem:[#allocation3 + $0x13c] sm:$0xf]
    %v133 = vld [vmem:[#allocation3 + $0x140] sm:$0xf]
    %v134 = vld [vmem:[#allocation3 + $0x144] sm:$0xf]
    %v135 = vld [vmem:[#allocation3 + $0x148] sm:$0xf]
    %v136 = vld [vmem:[#allocation3 + $0x14c] sm:$0xf]
    %v137 = vld [vmem:[#allocation3 + $0x150] sm:$0xf]
    %v138 = vld [vmem:[#allocation3 + $0x154] sm:$0xf]
    %v139 = vld [vmem:[#allocation3 + $0x158] sm:$0xf]
    %v140 = vld [vmem:[#allocation3 + $0x15c] sm:$0xf]
    %v141 = vld [vmem:[#allocation3 + $0x160] sm:$0xf]
    %v142 = vld [vmem:[#allocation3 + $0x164] sm:$0xf]
    %v143 = vld [vmem:[#allocation3 + $0x168] sm:$0xf]
    %v144 = vld [vmem:[#allocation3 + $0x16c] sm:$0xf]
    %v145 = vld [vmem:[#allocation3 + $0x170] sm:$0xf]
    %v146 = vld [vmem:[#allocation3 + $0x174] sm:$0xf]
    %v147 = vld [vmem:[#allocation3 + $0x178] sm:$0xf]
    %v148 = vld [vmem:[#allocation3 + $0x17c] sm:$0xf]
    %v149 = vld [vmem:[#allocation3 + $0x180] sm:$0xf]
    %v150 = vld [vmem:[#allocation3 + $0x184] sm:$0xf]
    %v151 = vld [vmem:[%s2] sm:$0x1]
    %v153 = vlaneseq
    %v154 = vshrl.u32 %v153, 7
    %v155 = vsub.s32 0, %v154
    %v156 = vrot.slane %v151, %v155
    %v162 = vunpack.c.l.b16 %v49
    %v163 = vunpack.c.h.b16 %v49
    %v164 = vunpack.c.l.b16 %v50
    %v165 = vunpack.c.h.b16 %v50
    %v166 = vunpack.c.l.b16 %v51
    %v167 = vunpack.c.h.b16 %v51
    %v168 = vunpack.c.l.b16 %v52
    %v169 = vpack.c.b16 %v162, %v162
    %v170 = vpack.c.b16 %v163, %v163
    %v171 = vpack.c.b16 %v164, %v164
    %v172 = vpack.c.b16 %v165, %v165
    %v173 = vpack.c.b16 %v166, %v166
    %v174 = vpack.c.b16 %v167, %v167
    %v175 = vpack.c.b16 %v168, %v168
    %v280 = vunpack.c.l.b16 %v53
    %v281 = vunpack.c.l.b16 %v54
    %v282 = vunpack.c.l.b16 %v55
    %v283 = vunpack.c.l.b16 %v56
    %v284 = vunpack.c.l.b16 %v57
    %v285 = vunpack.c.l.b16 %v58
    %v286 = vunpack.c.l.b16 %v59
    %v287 = vunpack.c.l.b16 %v60
    %v288 = vunpack.c.l.b16 %v61
    %v289 = vunpack.c.l.b16 %v62
    %v290 = vunpack.c.l.b16 %v63
    %v291 = vunpack.c.l.b16 %v64
    %v292 = vunpack.c.l.b16 %v65
    %v293 = vunpack.c.l.b16 %v66
    %v294 = vunpack.c.l.b16 %v67
    %v295 = vunpack.c.l.b16 %v68
    %v296 = vunpack.c.l.b16 %v69
    %v297 = vunpack.c.l.b16 %v70
    %v298 = vunpack.c.l.b16 %v71
    %v299 = vunpack.c.l.b16 %v72
    %v300 = vunpack.c.l.b16 %v73
    %v301 = vunpack.c.l.b16 %v74
    %v302 = vunpack.c.l.b16 %v75
    %v303 = vunpack.c.l.b16 %v76
    %v304 = vunpack.c.l.b16 %v77
    %v305 = vunpack.c.l.b16 %v78
    %v306 = vunpack.c.l.b16 %v79
    %v307 = vunpack.c.l.b16 %v80
    %v308 = vunpack.c.l.b16 %v81
    %v309 = vunpack.c.l.b16 %v82
    %v310 = vunpack.c.l.b16 %v83
    %v311 = vunpack.c.l.b16 %v84
    %v312 = vunpack.c.l.b16 %v85
    %v313 = vunpack.c.l.b16 %v86
    %v314 = vunpack.c.l.b16 %v87
    %v315 = vunpack.c.l.b16 %v88
    %v316 = vunpack.c.l.b16 %v89
    %v317 = vunpack.c.l.b16 %v90
    %v318 = vunpack.c.l.b16 %v91
    %v319 = vunpack.c.l.b16 %v92
    %v320 = vunpack.c.l.b16 %v93
    %v321 = vunpack.c.l.b16 %v94
    %v322 = vunpack.c.l.b16 %v95
    %v323 = vunpack.c.l.b16 %v96
    %v324 = vunpack.c.l.b16 %v97
    %v325 = vunpack.c.l.b16 %v98
    %v326 = vunpack.c.l.b16 %v99
    %v327 = vunpack.c.l.b16 %v100
    %v328 = vunpack.c.l.b16 %v101
    %v329 = vunpack.c.l.b16 %v102
    %v330 = vunpack.c.l.b16 %v103
    %v331 = vunpack.c.l.b16 %v104
    %v332 = vunpack.c.l.b16 %v105
    %v333 = vunpack.c.l.b16 %v106
    %v334 = vunpack.c.l.b16 %v107
    %v335 = vunpack.c.l.b16 %v108
    %v336 = vunpack.c.l.b16 %v109
    %v337 = vunpack.c.l.b16 %v110
    %v338 = vunpack.c.l.b16 %v111
    %v339 = vunpack.c.l.b16 %v112
    %v340 = vunpack.c.l.b16 %v113
    %v341 = vunpack.c.l.b16 %v114
    %v342 = vunpack.c.l.b16 %v115
    %v343 = vunpack.c.l.b16 %v116
    %v344 = vunpack.c.l.b16 %v117
    %v345 = vunpack.c.l.b16 %v118
    %v346 = vunpack.c.l.b16 %v119
    %v347 = vunpack.c.l.b16 %v120
    %v348 = vunpack.c.l.b16 %v121
    %v349 = vunpack.c.l.b16 %v122
    %v350 = vunpack.c.l.b16 %v123
    %v351 = vunpack.c.l.b16 %v124
    %v352 = vunpack.c.l.b16 %v125
    %v353 = vunpack.c.l.b16 %v126
    %v354 = vunpack.c.l.b16 %v127
    %v355 = vunpack.c.l.b16 %v128
    %v356 = vunpack.c.l.b16 %v129
    %v357 = vunpack.c.l.b16 %v130
    %v358 = vunpack.c.l.b16 %v131
    %v359 = vunpack.c.l.b16 %v132
    %v360 = vunpack.c.l.b16 %v133
    %v361 = vunpack.c.l.b16 %v134
    %v362 = vunpack.c.l.b16 %v135
    %v363 = vunpack.c.l.b16 %v136
    %v364 = vunpack.c.l.b16 %v137
    %v365 = vunpack.c.l.b16 %v138
    %v366 = vunpack.c.l.b16 %v139
    %v367 = vunpack.c.l.b16 %v140
    %v368 = vunpack.c.l.b16 %v141
    %v369 = vunpack.c.l.b16 %v142
    %v370 = vunpack.c.l.b16 %v143
    %v371 = vunpack.c.l.b16 %v144
    %v372 = vunpack.c.l.b16 %v145
    %v373 = vunpack.c.l.b16 %v146
    %v374 = vunpack.c.l.b16 %v147
    %v375 = vunpack.c.l.b16 %v148
    %v376 = vunpack.c.l.b16 %v149
    %v377 = vunpack.c.l.b16 %v150
    %v378 = vpack.c.b16 %v281, %v280
    %v379 = vpack.c.b16 %v283, %v282
    %v380 = vpack.c.b16 %v285, %v284
    %v381 = vpack.c.b16 %v287, %v286
    %v382 = vpack.c.b16 %v289, %v288
    %v383 = vpack.c.b16 %v291, %v290
    %v384 = vpack.c.b16 %v293, %v292
    %v385 = vpack.c.b16 %v295, %v294
    %v386 = vpack.c.b16 %v297, %v296
    %v387 = vpack.c.b16 %v299, %v298
    %v388 = vpack.c.b16 %v301, %v300
    %v389 = vpack.c.b16 %v303, %v302
    %v390 = vpack.c.b16 %v305, %v304
    %v391 = vpack.c.b16 %v307, %v306
    %v392 = vpack.c.b16 %v309, %v308
    %v393 = vpack.c.b16 %v311, %v310
    %v394 = vpack.c.b16 %v313, %v312
    %v395 = vpack.c.b16 %v315, %v314
    %v396 = vpack.c.b16 %v317, %v316
    %v397 = vpack.c.b16 %v319, %v318
    %v398 = vpack.c.b16 %v321, %v320
    %v399 = vpack.c.b16 %v323, %v322
    %v400 = vpack.c.b16 %v325, %v324
    %v401 = vpack.c.b16 %v327, %v326
    %v402 = vpack.c.b16 %v329, %v328
    %v403 = vpack.c.b16 %v331, %v330
    %v404 = vpack.c.b16 %v333, %v332
    %v405 = vpack.c.b16 %v335, %v334
    %v406 = vpack.c.b16 %v337, %v336
    %v407 = vpack.c.b16 %v339, %v338
    %v408 = vpack.c.b16 %v341, %v340
    %v409 = vpack.c.b16 %v343, %v342
    %v410 = vpack.c.b16 %v345, %v344
    %v411 = vpack.c.b16 %v347, %v346
    %v412 = vpack.c.b16 %v349, %v348
    %v413 = vpack.c.b16 %v351, %v350
    %v414 = vpack.c.b16 %v353, %v352
    %v415 = vpack.c.b16 %v355, %v354
    %v416 = vpack.c.b16 %v357, %v356
    %v417 = vpack.c.b16 %v359, %v358
    %v418 = vpack.c.b16 %v361, %v360
    %v419 = vpack.c.b16 %v363, %v362
    %v420 = vpack.c.b16 %v365, %v364
    %v421 = vpack.c.b16 %v367, %v366
    %v422 = vpack.c.b16 %v369, %v368
    %v423 = vpack.c.b16 %v371, %v370
    %v424 = vpack.c.b16 %v373, %v372
    %v425 = vpack.c.b16 %v375, %v374
    %v426 = vpack.c.b16 %v377, %v376
    %vm476 = vcmask 130048
    %v478 = vsel %vm476, %v175, 0
    %480 = vmatprep.subr.bf16.mxu0 0
    %481 = vmatpush1.bf16.msra.mxu0 %v378
    %482 = vmatprep.subr.bf16.mxu0 0
    %483 = vmatpush1.bf16.msra.mxu0 %v379
    %484 = vmatprep.subr.bf16.mxu0 0
    %485 = vmatpush1.bf16.msra.mxu0 %v380
    %486 = vmatprep.subr.bf16.mxu0 0
    %487 = vmatpush1.bf16.msra.mxu0 %v381
    %488 = vmatprep.subr.bf16.mxu0 0
    %489 = vmatpush1.bf16.msra.mxu0 %v382
    %490 = vmatprep.subr.bf16.mxu0 0
    %491 = vmatpush1.bf16.msra.mxu0 %v383
    %492 = vmatprep.subr.bf16.mxu0 0
    %493 = vmatpush1.bf16.msra.mxu0 %v384
    %494 = vmatprep.subr.bf16.mxu0 0
    %495 = vmatpush1.bf16.msra.mxu0 %v385
    %496 = vmatprep.subr.bf16.mxu0 0
    %497 = vmatpush1.bf16.msra.mxu0 %v386
    %498 = vmatprep.subr.bf16.mxu0 0
    %499 = vmatpush1.bf16.msra.mxu0 %v387
    %500 = vmatprep.subr.bf16.mxu0 0
    %501 = vmatpush1.bf16.msra.mxu0 %v388
    %502 = vmatprep.subr.bf16.mxu0 0
    %503 = vmatpush1.bf16.msra.mxu0 %v389
    %504 = vmatprep.subr.bf16.mxu0 0
    %505 = vmatpush1.bf16.msra.mxu0 %v390
    %506 = vmatprep.subr.bf16.mxu0 0
    %507 = vmatpush1.bf16.msra.mxu0 %v391
    %508 = vmatprep.subr.bf16.mxu0 0
    %509 = vmatpush1.bf16.msra.mxu0 %v392
    %510 = vmatprep.subr.bf16.mxu0 0
    %511 = vmatpush1.bf16.msra.mxu0 %v393
    %512 = vmatprep.mubr.bf16.mxu0 %v170
    %513 = vmatmul.mubr.bf16.gmra.mrb[0].mxu0 %v169
    %v514 = vpop.f32.mrb[0].mxu0
    %v515 = vadd.f32 %v156, %v514
    %v516 = vpop.f32.mrb[0].mxu0
    %v517 = vpop.f32.mrb[0].mxu0
    %v518 = vpop.f32.mrb[0].mxu0
    %519 = vdwg.mxu0
    %520 = vmatprep.subr.bf16.mxu0 0
    %521 = vmatpush1.bf16.msra.mxu0 %v394
    %522 = vmatprep.subr.bf16.mxu0 0
    %523 = vmatpush1.bf16.msra.mxu0 %v395
    %524 = vmatprep.subr.bf16.mxu0 0
    %525 = vmatpush1.bf16.msra.mxu0 %v396
    %526 = vmatprep.subr.bf16.mxu0 0
    %527 = vmatpush1.bf16.msra.mxu0 %v397
    %528 = vmatprep.subr.bf16.mxu0 0
    %529 = vmatpush1.bf16.msra.mxu0 %v398
    %530 = vmatprep.subr.bf16.mxu0 0
    %531 = vmatpush1.bf16.msra.mxu0 %v399
    %532 = vmatprep.subr.bf16.mxu0 0
    %533 = vmatpush1.bf16.msra.mxu0 %v400
    %534 = vmatprep.subr.bf16.mxu0 0
    %535 = vmatpush1.bf16.msra.mxu0 %v401
    %536 = vmatprep.subr.bf16.mxu0 0
    %537 = vmatpush1.bf16.msra.mxu0 %v402
    %538 = vmatprep.subr.bf16.mxu0 0
    %539 = vmatpush1.bf16.msra.mxu0 %v403
    %540 = vmatprep.subr.bf16.mxu0 0
    %541 = vmatpush1.bf16.msra.mxu0 %v404
    %542 = vmatprep.subr.bf16.mxu0 0
    %543 = vmatpush1.bf16.msra.mxu0 %v405
    %544 = vmatprep.subr.bf16.mxu0 0
    %545 = vmatpush1.bf16.msra.mxu0 %v406
    %546 = vmatprep.subr.bf16.mxu0 0
    %547 = vmatpush1.bf16.msra.mxu0 %v407
    %548 = vmatprep.subr.bf16.mxu0 0
    %549 = vmatpush1.bf16.msra.mxu0 %v408
    %550 = vmatprep.subr.bf16.mxu0 0
    %551 = vmatpush1.bf16.msra.mxu0 %v409
    %552 = vmatprep.mubr.bf16.mxu0 %v172
    %553 = vmatmul.mubr.bf16.gmra.mrb[0].mxu0 %v171
    %v554 = vpop.f32.mrb[0].mxu0
    %v555 = vadd.f32 %v515, %v554
    %v556 = vpop.f32.mrb[0].mxu0
    %v557 = vpop.f32.mrb[0].mxu0
    %v558 = vpop.f32.mrb[0].mxu0
    %559 = vdwg.mxu0
    %560 = vmatprep.subr.bf16.mxu0 0
    %561 = vmatpush1.bf16.msra.mxu0 %v410
    %562 = vmatprep.subr.bf16.mxu0 0
    %563 = vmatpush1.bf16.msra.mxu0 %v411
    %564 = vmatprep.subr.bf16.mxu0 0
    %565 = vmatpush1.bf16.msra.mxu0 %v412
    %566 = vmatprep.subr.bf16.mxu0 0
    %567 = vmatpush1.bf16.msra.mxu0 %v413
    %568 = vmatprep.subr.bf16.mxu0 0
    %569 = vmatpush1.bf16.msra.mxu0 %v414
    %570 = vmatprep.subr.bf16.mxu0 0
    %571 = vmatpush1.bf16.msra.mxu0 %v415
    %572 = vmatprep.subr.bf16.mxu0 0
    %573 = vmatpush1.bf16.msra.mxu0 %v416
    %574 = vmatprep.subr.bf16.mxu0 0
    %575 = vmatpush1.bf16.msra.mxu0 %v417
    %576 = vmatprep.subr.bf16.mxu0 0
    %577 = vmatpush1.bf16.msra.mxu0 %v418
    %578 = vmatprep.subr.bf16.mxu0 0
    %579 = vmatpush1.bf16.msra.mxu0 %v419
    %580 = vmatprep.subr.bf16.mxu0 0
    %581 = vmatpush1.bf16.msra.mxu0 %v420
    %582 = vmatprep.subr.bf16.mxu0 0
    %583 = vmatpush1.bf16.msra.mxu0 %v421
    %584 = vmatprep.subr.bf16.mxu0 0
    %585 = vmatpush1.bf16.msra.mxu0 %v422
    %586 = vmatprep.subr.bf16.mxu0 0
    %587 = vmatpush1.bf16.msra.mxu0 %v423
    %588 = vmatprep.subr.bf16.mxu0 0
    %589 = vmatpush1.bf16.msra.mxu0 %v424
    %590 = vmatprep.subr.bf16.mxu0 0
    %591 = vmatpush1.bf16.msra.mxu0 %v425
    %592 = vmatprep.mubr.bf16.mxu0 %v174
    %593 = vmatmul.mubr.bf16.gmra.mrb[0].mxu0 %v173
    %v594 = vpop.f32.mrb[0].mxu0
    %v595 = vadd.f32 %v555, %v594
    %v596 = vpop.f32.mrb[0].mxu0
    %v597 = vpop.f32.mrb[0].mxu0
    %v598 = vpop.f32.mrb[0].mxu0
    %599 = vdwg.mxu0
    %600 = vmatprep.subr.bf16.mxu0 0
    %601 = vmatpush1.bf16.msra.mxu0 %v426
    %602 = vmatprep.subr.bf16.mxu0 0
    %603 = vmatpush1.bf16.msra.mxu0 0
    %604 = vmatprep.subr.bf16.mxu0 0
    %605 = vmatpush1.bf16.msra.mxu0 0
    %606 = vmatprep.subr.bf16.mxu0 0
    %607 = vmatpush1.bf16.msra.mxu0 0
    %608 = vmatprep.subr.bf16.mxu0 0
    %609 = vmatpush1.bf16.msra.mxu0 0
    %610 = vmatprep.subr.bf16.mxu0 0
    %611 = vmatpush1.bf16.msra.mxu0 0
    %612 = vmatprep.subr.bf16.mxu0 0
    %613 = vmatpush1.bf16.msra.mxu0 0
    %614 = vmatprep.subr.bf16.mxu0 0
    %615 = vmatpush1.bf16.msra.mxu0 0
    %616 = vmatprep.subr.bf16.mxu0 0
    %617 = vmatpush1.bf16.msra.mxu0 0
    %618 = vmatprep.subr.bf16.mxu0 0
    %619 = vmatpush1.bf16.msra.mxu0 0
    %620 = vmatprep.subr.bf16.mxu0 0
    %621 = vmatpush1.bf16.msra.mxu0 0
    %622 = vmatprep.subr.bf16.mxu0 0
    %623 = vmatpush1.bf16.msra.mxu0 0
    %624 = vmatprep.subr.bf16.mxu0 0
    %625 = vmatpush1.bf16.msra.mxu0 0
    %626 = vmatprep.subr.bf16.mxu0 0
    %627 = vmatpush1.bf16.msra.mxu0 0
    %628 = vmatprep.subr.bf16.mxu0 0
    %629 = vmatpush1.bf16.msra.mxu0 0
    %630 = vmatprep.subr.bf16.mxu0 0
    %631 = vmatpush1.bf16.msra.mxu0 0
    %632 = vmatprep.mubr.bf16.mxu0 0
    %633 = vmatmul.mubr.bf16.gmra.mrb[0].mxu0 %v478
    %v634 = vpop.f32.mrb[0].mxu0
    %v635 = vadd.f32 %v595, %v634
    %v636 = vpop.f32.mrb[0].mxu0
    %v637 = vpop.f32.mrb[0].mxu0
    %v638 = vpop.f32.mrb[0].mxu0
    %639 = vdwg.mxu0
    %vm640 = vcmp.gt.f32.partialorder %v635, 0.0
    %v641 = vmul.f32 %v635, 0.2
    %v642 = vsel %vm640, %v635, %v641
    %v643 = vpack.c.bf16 %v642, %v642
    %v644 = vld [vmem:[%s3] sm:$0xf]
    %v645 = vld [vmem:[%s3 + $0x4] sm:$0xf]
    %v646 = vld [vmem:[%s3 + $0x8] sm:$0xf]
    %v647 = vld [vmem:[%s3 + $0xc] sm:$0xf]
    %v648 = vld [vmem:[%s3 + $0x10] sm:$0xf]
    %v649 = vld [vmem:[%s3 + $0x14] sm:$0xf]
    %v650 = vld [vmem:[%s3 + $0x18] sm:$0xf]
    %v651 = vld [vmem:[%s3 + $0x1c] sm:$0xf]
    %v652 = vld [vmem:[%s3 + $0x20] sm:$0xf]
    %v653 = vld [vmem:[%s3 + $0x24] sm:$0xf]
    %v654 = vld [vmem:[%s3 + $0x28] sm:$0xf]
    %v655 = vld [vmem:[%s3 + $0x2c] sm:$0xf]
    %v656 = vld [vmem:[%s3 + $0x30] sm:$0xf]
    %v657 = vld [vmem:[%s3 + $0x34] sm:$0xf]
    %v658 = vld [vmem:[%s3 + $0x38] sm:$0xf]
    %v659 = vld [vmem:[%s3 + $0x3c] sm:$0xf]
    %v660 = vld [vmem:[%s4] sm:$0x1]
    %v662 = vlaneseq
    %v663 = vshrl.u32 %v662, 7
    %v664 = vsub.s32 0, %v663
    %v665 = vrot.slane %v660, %v664
    %v683 = vunpack.c.l.b16 %v644
    %v684 = vunpack.c.l.b16 %v645
    %v685 = vunpack.c.l.b16 %v646
    %v686 = vunpack.c.l.b16 %v647
    %v687 = vunpack.c.l.b16 %v648
    %v688 = vunpack.c.l.b16 %v649
    %v689 = vunpack.c.l.b16 %v650
    %v690 = vunpack.c.l.b16 %v651
    %v691 = vunpack.c.l.b16 %v652
    %v692 = vunpack.c.l.b16 %v653
    %v693 = vunpack.c.l.b16 %v654
    %v694 = vunpack.c.l.b16 %v655
    %v695 = vunpack.c.l.b16 %v656
    %v696 = vunpack.c.l.b16 %v657
    %v697 = vunpack.c.l.b16 %v658
    %v698 = vunpack.c.l.b16 %v659
    %v699 = vpack.c.b16 %v684, %v683
    %v700 = vpack.c.b16 %v686, %v685
    %v701 = vpack.c.b16 %v688, %v687
    %v702 = vpack.c.b16 %v690, %v689
    %v703 = vpack.c.b16 %v692, %v691
    %v704 = vpack.c.b16 %v694, %v693
    %v705 = vpack.c.b16 %v696, %v695
    %v706 = vpack.c.b16 %v698, %v697
    %715 = vmatprep.subr.bf16.mxu0 0
    %716 = vmatpush1.bf16.msra.mxu0 %v699
    %717 = vmatprep.subr.bf16.mxu0 0
    %718 = vmatpush1.bf16.msra.mxu0 %v700
    %719 = vmatprep.subr.bf16.mxu0 0
    %720 = vmatpush1.bf16.msra.mxu0 %v701
    %721 = vmatprep.subr.bf16.mxu0 0
    %722 = vmatpush1.bf16.msra.mxu0 %v702
    %723 = vmatprep.subr.bf16.mxu0 0
    %724 = vmatpush1.bf16.msra.mxu0 %v703
    %725 = vmatprep.subr.bf16.mxu0 0
    %726 = vmatpush1.bf16.msra.mxu0 %v704
    %727 = vmatprep.subr.bf16.mxu0 0
    %728 = vmatpush1.bf16.msra.mxu0 %v705
    %729 = vmatprep.subr.bf16.mxu0 0
    %730 = vmatpush1.bf16.msra.mxu0 %v706
    %731 = vmatprep.subr.bf16.mxu0 0
    %732 = vmatpush1.bf16.msra.mxu0 0
    %733 = vmatprep.subr.bf16.mxu0 0
    %734 = vmatpush1.bf16.msra.mxu0 0
    %735 = vmatprep.subr.bf16.mxu0 0
    %736 = vmatpush1.bf16.msra.mxu0 0
    %737 = vmatprep.subr.bf16.mxu0 0
    %738 = vmatpush1.bf16.msra.mxu0 0
    %739 = vmatprep.subr.bf16.mxu0 0
    %740 = vmatpush1.bf16.msra.mxu0 0
    %741 = vmatprep.subr.bf16.mxu0 0
    %742 = vmatpush1.bf16.msra.mxu0 0
    %743 = vmatprep.subr.bf16.mxu0 0
    %744 = vmatpush1.bf16.msra.mxu0 0
    %745 = vmatprep.subr.bf16.mxu0 0
    %746 = vmatpush1.bf16.msra.mxu0 0
    %747 = vmatprep.mubr.bf16.mxu0 0
    %748 = vmatmul.mubr.bf16.gmra.mrb[0].mxu0 %v643
    %v749 = vpop.f32.mrb[0].mxu0
    %v750 = vadd.f32 %v665, %v749
    %v751 = vpop.f32.mrb[0].mxu0
    %v752 = vpop.f32.mrb[0].mxu0
    %v753 = vpop.f32.mrb[0].mxu0
    %754 = vdwg.mxu0
    %vm755 = vcmp.gt.f32.partialorder %v750, 0.0
    %v756 = vmul.f32 %v750, 0.2
    %v757 = vsel %vm755, %v750, %v756
    %v758 = vpack.c.bf16 %v757, %v757
    %v759 = vld [vmem:[%s5] sm:$0xf]
    %v760 = vld [vmem:[%s5 + $0x4] sm:$0xf]
    %v761 = vld [vmem:[%s5 + $0x8] sm:$0xf]
    %v762 = vld [vmem:[%s5 + $0xc] sm:$0xf]
    %v763 = vld [vmem:[%s5 + $0x10] sm:$0xf]
    %v764 = vld [vmem:[%s5 + $0x14] sm:$0xf]
    %v765 = vld [vmem:[%s5 + $0x18] sm:$0xf]
    %v766 = vld [vmem:[%s5 + $0x1c] sm:$0xf]
    %v767 = vld [vmem:[%s6] sm:$0x1]
    %v769 = vlaneseq
    %v770 = vshrl.u32 %v769, 7
    %v771 = vsub.s32 0, %v770
    %v772 = vrot.slane %v767, %v771
    %v782 = vunpack.c.l.b16 %v759
    %v783 = vunpack.c.l.b16 %v760
    %v784 = vunpack.c.l.b16 %v761
    %v785 = vunpack.c.l.b16 %v762
    %v786 = vunpack.c.l.b16 %v763
    %v787 = vunpack.c.l.b16 %v764
    %v788 = vunpack.c.l.b16 %v765
    %v789 = vunpack.c.l.b16 %v766
    %v790 = vpack.c.b16 %v783, %v782
    %v791 = vpack.c.b16 %v785, %v784
    %v792 = vpack.c.b16 %v787, %v786
    %v793 = vpack.c.b16 %v789, %v788
    %vm798 = vcmask 523264
    %v800 = vsel %vm798, %v758, 0
    %802 = vmatprep.subr.bf16.mxu0 0
    %803 = vmatpush1.bf16.msra.mxu0 %v790
    %804 = vmatprep.subr.bf16.mxu0 0
    %805 = vmatpush1.bf16.msra.mxu0 %v791
    %806 = vmatprep.subr.bf16.mxu0 0
    %807 = vmatpush1.bf16.msra.mxu0 %v792
    %808 = vmatprep.subr.bf16.mxu0 0
    %809 = vmatpush1.bf16.msra.mxu0 %v793
    %810 = vmatprep.subr.bf16.mxu0 0
    %811 = vmatpush1.bf16.msra.mxu0 0
    %812 = vmatprep.subr.bf16.mxu0 0
    %813 = vmatpush1.bf16.msra.mxu0 0
    %814 = vmatprep.subr.bf16.mxu0 0
    %815 = vmatpush1.bf16.msra.mxu0 0
    %816 = vmatprep.subr.bf16.mxu0 0
    %817 = vmatpush1.bf16.msra.mxu0 0
    %818 = vmatprep.subr.bf16.mxu0 0
    %819 = vmatpush1.bf16.msra.mxu0 0
    %820 = vmatprep.subr.bf16.mxu0 0
    %821 = vmatpush1.bf16.msra.mxu0 0
    %822 = vmatprep.subr.bf16.mxu0 0
    %823 = vmatpush1.bf16.msra.mxu0 0
    %824 = vmatprep.subr.bf16.mxu0 0
    %825 = vmatpush1.bf16.msra.mxu0 0
    %826 = vmatprep.subr.bf16.mxu0 0
    %827 = vmatpush1.bf16.msra.mxu0 0
    %828 = vmatprep.subr.bf16.mxu0 0
    %829 = vmatpush1.bf16.msra.mxu0 0
    %830 = vmatprep.subr.bf16.mxu0 0
    %831 = vmatpush1.bf16.msra.mxu0 0
    %832 = vmatprep.subr.bf16.mxu0 0
    %833 = vmatpush1.bf16.msra.mxu0 0
    %834 = vmatprep.mubr.bf16.mxu0 0
    %835 = vmatmul.mubr.bf16.gmra.mrb[0].mxu0 %v800
    %v836 = vpop.f32.mrb[0].mxu0
    %v837 = vadd.f32 %v772, %v836
    %v838 = vpop.f32.mrb[0].mxu0
    %v839 = vpop.f32.mrb[0].mxu0
    %v840 = vpop.f32.mrb[0].mxu0
    %841 = vdwg.mxu0
    %vm842 = vcmp.gt.f32.partialorder %v837, 0.0
    %v843 = vmul.f32 %v837, 0.2
    %v844 = vsel %vm842, %v837, %v843
    %v845 = vld [vmem:[%s7] sm:$0x1]
    %v847 = vlaneseq
    %v848 = vshrl.u32 %v847, 7
    %v849 = vsub.s32 0, %v848
    %v850 = vrot.slane %v845, %v849
    %v852 = vmul.f32 %v844, %v850
    %vm853 = vcmask 261120
    %v854 = vsel %vm853, %v852, 0.0
    %855 = vadd.xlane.f32.xlu0 %v854
    %v856 = vpop.xlane.xlu0 %855
    %v857 = vld [vmem:[#allocation2] sm:$0x1]
    %v859 = vlaneseq
    %v860 = vshrl.u32 %v859, 7
    %v861 = vsub.s32 0, %v860
    %v862 = vrot.slane %v857, %v861
    %v864 = vadd.f32 %v856, %v862
    %vm865 = vcmp.gt.f32.partialorder %v864, 0.0
    %v866 = vmul.f32 %v864, 0.2
    %v867 = vsel %vm865, %v864, %v866
    %vm868 = vcmask 7168
    %869 = vst.msk [vmem:[%s9] sm:$0xff] %vm868, %v867
    // Predicated region
    $region42: #{tpu_custom_call.1} parent=1 // pred_check
      _
    $region43: #{tpu_custom_call.1} parent=1 // pred_check_branch
      %871 = sbr.rel (0) target = $region45
    $region44: #{tpu_custom_call.1} parent=1 // pred_region
      _
    $region45: #{tpu_custom_call.1} parent=1 // pred_fallthru
      _
    // Predicated region
    $region46: #{tpu_custom_call.1} parent=1 // pred_check
      _
    $region47: #{tpu_custom_call.1} parent=1 // pred_check_branch
      %873 = sbr.rel (0) target = $region49
    $region48: #{tpu_custom_call.1} parent=1 // pred_region
      _
    $region49: #{tpu_custom_call.1} parent=1 // pred_fallthru
      _
    %874 = vsyncpa [#allocation4], 1

</llo_original>
